<compile_context>
chip_gen: v6e
topology: v6e:2x2x1
jax: 0.10.0
libtpu: 0.0.40
codegen_flags: <defaults>
</compile_context>

<pallas_src>
import functools

import jax
import jax.numpy as jnp
from jax.experimental import pallas as pl
from jax.experimental.pallas import tpu as pltpu

PAD_VALUE = 0


def _round_up(x, m):
    return ((x + m - 1) // m) * m


def _cls_loss_kernel(pred_ref, tgt_ref, out_ref, *, mf, group, ncls, pad_value):
    """One row-tile of the masked cross-entropy reduction.

    pred_ref: (tm, group*ncls) logits in native dtype; `group` original rows
              are folded into the lane dimension (lane-dense DMA + VMEM).
    tgt_ref : (tm, group) int32 targets for the same folded rows.
    out_ref : (1, 1, 128) f32 partials; lane 0 = loss sum, lane 1 = valid count.
    """
    i = pl.program_id(0)
    tm = pred_ref.shape[0]

    # Folded-row index; rows past `mf` are the ragged last tile's DMA padding.
    # They are excluded with jnp.where (select, not multiply), so garbage/NaN
    # in padded rows can never propagate into the result.
    row_id = i * tm + jax.lax.broadcasted_iota(jnp.int32, (tm, 1), 0)
    row_ok = row_id < mf                                              # (tm, 1)

    col = jax.lax.broadcasted_iota(jnp.int32, (tm, ncls), 1)          # (tm, C)

    loss_acc = jnp.zeros((tm, 1), jnp.float32)
    cnt_acc = jnp.zeros((tm, 1), jnp.float32)

    for g in range(group):                                   # static unroll, G small
        # Static lane slice of the lane-dense tile; upcast tile-locally to f32.
        x = pred_ref[:, g * ncls:(g + 1) * ncls].astype(jnp.float32)  # (tm, C)
        tgt = tgt_ref[:, g:g + 1]                                     # (tm, 1)

        # Stable log-sum-exp with the exact per-row max (matches reference).
        row_max = jnp.max(x, axis=-1, keepdims=True)                  # (tm, 1)
        shifted = x - row_max                                         # (tm, C)
        sum_exp = jnp.sum(jnp.exp(shifted), axis=-1, keepdims=True)   # (tm, 1)

        # shifted[r, tgt[r]] via one-hot select (row_max cancels in the loss).
        picked = jnp.sum(jnp.where(col == tgt, shifted, 0.0),
                         axis=-1, keepdims=True)                      # (tm, 1)

        valid = jnp.logical_and(row_ok, tgt != pad_value)             # (tm, 1)
        loss_acc = loss_acc + jnp.where(valid, jnp.log(sum_exp) - picked, 0.0)
        cnt_acc = cnt_acc + valid.astype(jnp.float32)

    tile_sum = jnp.sum(loss_acc, axis=0, keepdims=True).reshape(1, 1, 1)
    tile_cnt = jnp.sum(cnt_acc, axis=0, keepdims=True).reshape(1, 1, 1)

    # One lane-dense (unmasked) 512 B store per tile: lane 0 = sum, lane 1 = count.
    lane = jax.lax.broadcasted_iota(jnp.int32, (1, 1, 128), 2)
    out_ref[...] = jnp.where(lane == 0, tile_sum,
                             jnp.where(lane == 1, tile_cnt, 0.0))


def _vmem_params():
    """Generation-aware (v5e/v6e: 128 MiB, v7x: 64 MiB) VMEM budgets."""
    try:
        cap = int(pltpu.get_tpu_info().vmem_capacity_bytes)
    except Exception:
        cap = 64 << 20                       # conservative (v7x-sized) fallback
    tile_budget = (cap * 3) // 8             # 24 MiB on v7x, 48 MiB on v5e/v6e
    vmem_limit = min((cap * 3) // 4, 100 << 20)   # 48 MiB on v7x, 96 MiB on v5e/v6e
    return tile_budget, vmem_limit


def _pick_group(m_rows, ncls):
    """Rows folded into the 128-lane dim: largest g <= 128//C dividing M."""
    gmax = max(1, min(128 // max(ncls, 1), 16))
    for g in range(gmax, 0, -1):
        if m_rows % g == 0:
            return g
    return 1


def _pick_tm(mf, width, group, ncls, itemsize, budget):
    """Folded-row tile: as large as the VMEM budget allows (<=8192, x8)."""
    lane_pad = lambda n: _round_up(max(n, 1), 128)
    per_row = (2 * lane_pad(width) * itemsize     # double-buffered logits tile
               + 2 * lane_pad(group) * 4          # double-buffered (lane-padded) targets
               + 3 * lane_pad(ncls) * 4)          # in-kernel f32 working slabs
    tm = budget // max(per_row, 1)
    tm = max(8, min(8192, (tm // 8) * 8))
    if mf >= 8:
        tm = min(tm, (mf // 8) * 8)               # block rows <= array rows (x8)
        # Keep at least 2 tiles so v7x can spread them over both TensorCores.
        two_tiles = _round_up(-(-mf // 2), 8)
        tm = min(tm, max(8, two_tiles))
    else:
        tm = mf                                   # tiny input: single full block
    return int(tm)


@jax.jit
def cls_loss(pred, target):
    """pred: [B, N, C] logits (any float dtype); target: i32[B, N]; PAD ignored."""
    B, N, C = pred.shape
    M = B * N

    G = _pick_group(M, C)
    Mf, W = M // G, G * C

    # Free reshapes (same contiguous HBM layout): no cast, no pad of logits.
    pred2 = pred.reshape(Mf, W)
    tgt2 = target.reshape(Mf, G).astype(jnp.int32)

    budget, vmem_limit = _vmem_params()
    tm = _pick_tm(Mf, W, G, C, pred2.dtype.itemsize, budget)
    num_tiles = pl.cdiv(Mf, tm)

    kernel = functools.partial(_cls_loss_kernel, mf=Mf, group=G, ncls=C,
                               pad_value=PAD_VALUE)

    cost = pl.CostEstimate(
        flops=6 * M * C,
        transcendentals=M * C + 2 * M,
        bytes_accessed=M * C * pred2.dtype.itemsize + M * 4 + num_tiles * 512,
    )

    part = pl.pallas_call(
        kernel,
        out_shape=jax.ShapeDtypeStruct((num_tiles, 1, 128), jnp.float32),
        grid_spec=pltpu.PrefetchScalarGridSpec(
            num_scalar_prefetch=0,
            grid=(num_tiles,),
            in_specs=[
                pl.BlockSpec((tm, W), lambda i: (i, 0)),
                pl.BlockSpec((tm, G), lambda i: (i, 0)),
            ],
            out_specs=pl.BlockSpec((1, 1, 128), lambda i: (i, 0, 0)),
        ),
        compiler_params=pltpu.CompilerParams(
            dimension_semantics=("parallel",),   # per-tile partials -> both v7x TCs
            vmem_limit_bytes=int(vmem_limit),
        ),
        cost_estimate=cost,
    )(pred2, tgt2)

    total = jnp.sum(part[:, 0, 0])
    # Per-tile counts are exact small integers in f32; sum them as int32.
    count = jnp.sum(part[:, 0, 1].astype(jnp.int32))
    # Note: all-PAD batch gives 0/0 -> NaN, same as the PyTorch reference.
    return total / count.astype(jnp.float32)


def _cls_loss_ref(pred, target):
    """Pure-JAX reference of the PyTorch module (for verification)."""
    B, N, C = pred.shape
    logits = pred.reshape(-1, C).astype(jnp.float32)
    tgt = target.reshape(-1).astype(jnp.int32)
    valid = (tgt != PAD_VALUE).astype(jnp.float32)
    lse = jax.nn.logsumexp(logits, axis=-1)
    picked = jnp.take_along_axis(logits, tgt[:, None], axis=-1)[:, 0]
    per_row = (lse - picked) * valid
    return jnp.sum(per_row) / jnp.sum(valid)


if __name__ == "__main__":
    key = jax.random.PRNGKey(0)
    k1, k2, k3, k4 = jax.random.split(key, 4)

    # Case 1: small f32 case; M divisible by the fold factor (G=4, W=128).
    B, N, C = 2, 8, 32
    pred = jax.random.normal(k1, (B, N, C), dtype=jnp.float32)
    # Targets in [0, C); value 0 == PAD -> those positions are ignored.
    target = jax.random.randint(k2, (B, N), 0, C, dtype=jnp.int32)
    loss = cls_loss(pred, target)
    jax.block_until_ready(loss)
    ref = _cls_loss_ref(pred, target)
    assert jnp.allclose(loss, ref, rtol=1e-5, atol=1e-5), (loss, ref)

    # Case 2: bf16 logits + ragged row count (M=74 -> fold G=2, ragged last
    # tile masked in-kernel; exercises native-dtype DMA, no host pad/cast).
    B2, N2, C2 = 2, 37, 32
    pred_b = jax.random.normal(k3, (B2, N2, C2), dtype=jnp.bfloat16)
    target_b = jax.random.randint(k4, (B2, N2), 0, C2, dtype=jnp.int32)
    loss_b = cls_loss(pred_b, target_b)
    jax.block_until_ready(loss_b)
    ref_b = _cls_loss_ref(pred_b, target_b)
    assert jnp.allclose(loss_b, ref_b, rtol=1e-4, atol=1e-4), (loss_b, ref_b)

    print("KERNEL_OK")
</pallas_src>

<mosaic_0001>
module attributes {stable_mosaic.version = 11 : i64} {
  func.func @_cls_loss_kernel(%arg0: i32, %arg1: memref<4x128xf32, #tpu.memory_space<vmem>>, %arg2: memref<4x4xi32, #tpu.memory_space<vmem>>, %arg3: memref<1x1x128xf32, #tpu.memory_space<vmem>>) attributes {dimension_semantics = [#tpu.dimension_semantics<parallel>], iteration_bounds = array<i64: 1>, scalar_prefetch = 0 : i64, scratch_operands = 0 : i64, tpu.core_type = #tpu.core_type<tc>, window_params = [{transform_indices = @transform_0, window_bounds = array<i64: 4, 128>}, {transform_indices = @transform_1, window_bounds = array<i64: 4, 4>}, {transform_indices = @transform_2, window_bounds = array<i64: 1, 1, 128>}]} {
    %c4_i32 = arith.constant 4 : i32
    %0 = arith.muli %arg0, %c4_i32 : i32
    %1 = tpu.iota {dimensions = array<i32: 0>} : vector<4x1xi32>
    %2 = vector.broadcast %0 : i32 to vector<4x1xi32>
    %3 = arith.addi %2, %1 : vector<4x1xi32>
    %c4_i32_0 = arith.constant 4 : i32
    %4 = vector.broadcast %c4_i32_0 : i32 to vector<4x1xi32>
    %5 = arith.cmpi slt, %3, %4 : vector<4x1xi32>
    %6 = tpu.iota {dimensions = array<i32: 1>} : vector<4x32xi32>
    %cst = arith.constant 0.000000e+00 : f32
    %7 = vector.broadcast %cst : f32 to vector<4x1xf32>
    %cst_1 = arith.constant 0.000000e+00 : f32
    %8 = vector.broadcast %cst_1 : f32 to vector<4x1xf32>
    %c0 = arith.constant 0 : index
    %c0_2 = arith.constant 0 : index
    %9 = vector.load %arg1[%c0, %c0_2] : memref<4x128xf32, #tpu.memory_space<vmem>>, vector<4x32xf32>
    %c0_3 = arith.constant 0 : index
    %c0_4 = arith.constant 0 : index
    %10 = vector.load %arg2[%c0_3, %c0_4] : memref<4x4xi32, #tpu.memory_space<vmem>>, vector<4x1xi32>
    %cst_5 = arith.constant dense<0xFF800000> : vector<4xf32>
    %11 = vector.multi_reduction <maximumf>, %9, %cst_5 [1] : vector<4x32xf32> to vector<4xf32>
    %12 = vector.shape_cast %11 : vector<4xf32> to vector<4x1xf32>
    %13 = vector.broadcast %12 : vector<4x1xf32> to vector<4x32xf32>
    %14 = arith.subf %9, %13 : vector<4x32xf32>
    %15 = math.exp %14 : vector<4x32xf32>
    %cst_6 = arith.constant dense<0.000000e+00> : vector<4xf32>
    %16 = vector.multi_reduction <add>, %15, %cst_6 [1] : vector<4x32xf32> to vector<4xf32>
    %17 = vector.shape_cast %16 : vector<4xf32> to vector<4x1xf32>
    %18 = vector.broadcast %10 : vector<4x1xi32> to vector<4x32xi32>
    %19 = arith.cmpi eq, %6, %18 : vector<4x32xi32>
    %cst_7 = arith.constant 0.000000e+00 : f32
    %20 = vector.broadcast %cst_7 : f32 to vector<4x32xf32>
    %21 = arith.select %19, %14, %20 : vector<4x32xi1>, vector<4x32xf32>
    %cst_8 = arith.constant dense<0.000000e+00> : vector<4xf32>
    %22 = vector.multi_reduction <add>, %21, %cst_8 [1] : vector<4x32xf32> to vector<4xf32>
    %23 = vector.shape_cast %22 : vector<4xf32> to vector<4x1xf32>
    %c0_i32 = arith.constant 0 : i32
    %24 = vector.broadcast %c0_i32 : i32 to vector<4x1xi32>
    %25 = arith.cmpi ne, %10, %24 : vector<4x1xi32>
    %26 = arith.andi %5, %25 : vector<4x1xi1>
    %27 = math.log %17 : vector<4x1xf32>
    %28 = arith.subf %27, %23 : vector<4x1xf32>
    %cst_9 = arith.constant 0.000000e+00 : f32
    %29 = vector.broadcast %cst_9 : f32 to vector<4x1xf32>
    %30 = arith.select %26, %28, %29 : vector<4x1xi1>, vector<4x1xf32>
    %31 = arith.addf %7, %30 : vector<4x1xf32>
    %32 = arith.extui %26 : vector<4x1xi1> to vector<4x1xi32>
    %33 = arith.sitofp %32 : vector<4x1xi32> to vector<4x1xf32>
    %34 = arith.addf %8, %33 : vector<4x1xf32>
    %c0_10 = arith.constant 0 : index
    %c32 = arith.constant 32 : index
    %35 = vector.load %arg1[%c0_10, %c32] : memref<4x128xf32, #tpu.memory_space<vmem>>, vector<4x32xf32>
    %c0_11 = arith.constant 0 : index
    %c1 = arith.constant 1 : index
    %36 = vector.load %arg2[%c0_11, %c1] : memref<4x4xi32, #tpu.memory_space<vmem>>, vector<4x1xi32>
    %cst_12 = arith.constant dense<0xFF800000> : vector<4xf32>
    %37 = vector.multi_reduction <maximumf>, %35, %cst_12 [1] : vector<4x32xf32> to vector<4xf32>
    %38 = vector.shape_cast %37 : vector<4xf32> to vector<4x1xf32>
    %39 = vector.broadcast %38 : vector<4x1xf32> to vector<4x32xf32>
    %40 = arith.subf %35, %39 : vector<4x32xf32>
    %41 = math.exp %40 : vector<4x32xf32>
    %cst_13 = arith.constant dense<0.000000e+00> : vector<4xf32>
    %42 = vector.multi_reduction <add>, %41, %cst_13 [1] : vector<4x32xf32> to vector<4xf32>
    %43 = vector.shape_cast %42 : vector<4xf32> to vector<4x1xf32>
    %44 = vector.broadcast %36 : vector<4x1xi32> to vector<4x32xi32>
    %45 = arith.cmpi eq, %6, %44 : vector<4x32xi32>
    %cst_14 = arith.constant 0.000000e+00 : f32
    %46 = vector.broadcast %cst_14 : f32 to vector<4x32xf32>
    %47 = arith.select %45, %40, %46 : vector<4x32xi1>, vector<4x32xf32>
    %cst_15 = arith.constant dense<0.000000e+00> : vector<4xf32>
    %48 = vector.multi_reduction <add>, %47, %cst_15 [1] : vector<4x32xf32> to vector<4xf32>
    %49 = vector.shape_cast %48 : vector<4xf32> to vector<4x1xf32>
    %c0_i32_16 = arith.constant 0 : i32
    %50 = vector.broadcast %c0_i32_16 : i32 to vector<4x1xi32>
    %51 = arith.cmpi ne, %36, %50 : vector<4x1xi32>
    %52 = arith.andi %5, %51 : vector<4x1xi1>
    %53 = math.log %43 : vector<4x1xf32>
    %54 = arith.subf %53, %49 : vector<4x1xf32>
    %cst_17 = arith.constant 0.000000e+00 : f32
    %55 = vector.broadcast %cst_17 : f32 to vector<4x1xf32>
    %56 = arith.select %52, %54, %55 : vector<4x1xi1>, vector<4x1xf32>
    %57 = arith.addf %31, %56 : vector<4x1xf32>
    %58 = arith.extui %52 : vector<4x1xi1> to vector<4x1xi32>
    %59 = arith.sitofp %58 : vector<4x1xi32> to vector<4x1xf32>
    %60 = arith.addf %34, %59 : vector<4x1xf32>
    %c0_18 = arith.constant 0 : index
    %c64 = arith.constant 64 : index
    %61 = vector.load %arg1[%c0_18, %c64] : memref<4x128xf32, #tpu.memory_space<vmem>>, vector<4x32xf32>
    %c0_19 = arith.constant 0 : index
    %c2 = arith.constant 2 : index
    %62 = vector.load %arg2[%c0_19, %c2] : memref<4x4xi32, #tpu.memory_space<vmem>>, vector<4x1xi32>
    %cst_20 = arith.constant dense<0xFF800000> : vector<4xf32>
    %63 = vector.multi_reduction <maximumf>, %61, %cst_20 [1] : vector<4x32xf32> to vector<4xf32>
    %64 = vector.shape_cast %63 : vector<4xf32> to vector<4x1xf32>
    %65 = vector.broadcast %64 : vector<4x1xf32> to vector<4x32xf32>
    %66 = arith.subf %61, %65 : vector<4x32xf32>
    %67 = math.exp %66 : vector<4x32xf32>
    %cst_21 = arith.constant dense<0.000000e+00> : vector<4xf32>
    %68 = vector.multi_reduction <add>, %67, %cst_21 [1] : vector<4x32xf32> to vector<4xf32>
    %69 = vector.shape_cast %68 : vector<4xf32> to vector<4x1xf32>
    %70 = vector.broadcast %62 : vector<4x1xi32> to vector<4x32xi32>
    %71 = arith.cmpi eq, %6, %70 : vector<4x32xi32>
    %cst_22 = arith.constant 0.000000e+00 : f32
    %72 = vector.broadcast %cst_22 : f32 to vector<4x32xf32>
    %73 = arith.select %71, %66, %72 : vector<4x32xi1>, vector<4x32xf32>
    %cst_23 = arith.constant dense<0.000000e+00> : vector<4xf32>
    %74 = vector.multi_reduction <add>, %73, %cst_23 [1] : vector<4x32xf32> to vector<4xf32>
    %75 = vector.shape_cast %74 : vector<4xf32> to vector<4x1xf32>
    %c0_i32_24 = arith.constant 0 : i32
    %76 = vector.broadcast %c0_i32_24 : i32 to vector<4x1xi32>
    %77 = arith.cmpi ne, %62, %76 : vector<4x1xi32>
    %78 = arith.andi %5, %77 : vector<4x1xi1>
    %79 = math.log %69 : vector<4x1xf32>
    %80 = arith.subf %79, %75 : vector<4x1xf32>
    %cst_25 = arith.constant 0.000000e+00 : f32
    %81 = vector.broadcast %cst_25 : f32 to vector<4x1xf32>
    %82 = arith.select %78, %80, %81 : vector<4x1xi1>, vector<4x1xf32>
    %83 = arith.addf %57, %82 : vector<4x1xf32>
    %84 = arith.extui %78 : vector<4x1xi1> to vector<4x1xi32>
    %85 = arith.sitofp %84 : vector<4x1xi32> to vector<4x1xf32>
    %86 = arith.addf %60, %85 : vector<4x1xf32>
    %c0_26 = arith.constant 0 : index
    %c96 = arith.constant 96 : index
    %87 = vector.load %arg1[%c0_26, %c96] : memref<4x128xf32, #tpu.memory_space<vmem>>, vector<4x32xf32>
    %c0_27 = arith.constant 0 : index
    %c3 = arith.constant 3 : index
    %88 = vector.load %arg2[%c0_27, %c3] : memref<4x4xi32, #tpu.memory_space<vmem>>, vector<4x1xi32>
    %cst_28 = arith.constant dense<0xFF800000> : vector<4xf32>
    %89 = vector.multi_reduction <maximumf>, %87, %cst_28 [1] : vector<4x32xf32> to vector<4xf32>
    %90 = vector.shape_cast %89 : vector<4xf32> to vector<4x1xf32>
    %91 = vector.broadcast %90 : vector<4x1xf32> to vector<4x32xf32>
    %92 = arith.subf %87, %91 : vector<4x32xf32>
    %93 = math.exp %92 : vector<4x32xf32>
    %cst_29 = arith.constant dense<0.000000e+00> : vector<4xf32>
    %94 = vector.multi_reduction <add>, %93, %cst_29 [1] : vector<4x32xf32> to vector<4xf32>
    %95 = vector.shape_cast %94 : vector<4xf32> to vector<4x1xf32>
    %96 = vector.broadcast %88 : vector<4x1xi32> to vector<4x32xi32>
    %97 = arith.cmpi eq, %6, %96 : vector<4x32xi32>
    %cst_30 = arith.constant 0.000000e+00 : f32
    %98 = vector.broadcast %cst_30 : f32 to vector<4x32xf32>
    %99 = arith.select %97, %92, %98 : vector<4x32xi1>, vector<4x32xf32>
    %cst_31 = arith.constant dense<0.000000e+00> : vector<4xf32>
    %100 = vector.multi_reduction <add>, %99, %cst_31 [1] : vector<4x32xf32> to vector<4xf32>
    %101 = vector.shape_cast %100 : vector<4xf32> to vector<4x1xf32>
    %c0_i32_32 = arith.constant 0 : i32
    %102 = vector.broadcast %c0_i32_32 : i32 to vector<4x1xi32>
    %103 = arith.cmpi ne, %88, %102 : vector<4x1xi32>
    %104 = arith.andi %5, %103 : vector<4x1xi1>
    %105 = math.log %95 : vector<4x1xf32>
    %106 = arith.subf %105, %101 : vector<4x1xf32>
    %cst_33 = arith.constant 0.000000e+00 : f32
    %107 = vector.broadcast %cst_33 : f32 to vector<4x1xf32>
    %108 = arith.select %104, %106, %107 : vector<4x1xi1>, vector<4x1xf32>
    %109 = arith.addf %83, %108 : vector<4x1xf32>
    %110 = arith.extui %104 : vector<4x1xi1> to vector<4x1xi32>
    %111 = arith.sitofp %110 : vector<4x1xi32> to vector<4x1xf32>
    %112 = arith.addf %86, %111 : vector<4x1xf32>
    %cst_34 = arith.constant dense<0.000000e+00> : vector<1xf32>
    %113 = vector.multi_reduction <add>, %109, %cst_34 [0] : vector<4x1xf32> to vector<1xf32>
    %114 = vector.shape_cast %113 : vector<1xf32> to vector<1x1xf32>
    %115 = vector.shape_cast %114 : vector<1x1xf32> to vector<1x1x1xf32>
    %cst_35 = arith.constant dense<0.000000e+00> : vector<1xf32>
    %116 = vector.multi_reduction <add>, %112, %cst_35 [0] : vector<4x1xf32> to vector<1xf32>
    %117 = vector.shape_cast %116 : vector<1xf32> to vector<1x1xf32>
    %118 = vector.shape_cast %117 : vector<1x1xf32> to vector<1x1x1xf32>
    %119 = tpu.iota {dimensions = array<i32: 2>} : vector<1x1x128xi32>
    %c0_i32_36 = arith.constant 0 : i32
    %120 = vector.broadcast %c0_i32_36 : i32 to vector<1x1x128xi32>
    %121 = arith.cmpi eq, %119, %120 : vector<1x1x128xi32>
    %c1_i32 = arith.constant 1 : i32
    %122 = vector.broadcast %c1_i32 : i32 to vector<1x1x128xi32>
    %123 = arith.cmpi eq, %119, %122 : vector<1x1x128xi32>
    %cst_37 = arith.constant 0.000000e+00 : f32
    %124 = vector.shape_cast %118 : vector<1x1x1xf32> to vector<1x1x1xf32>
    %125 = vector.broadcast %124 : vector<1x1x1xf32> to vector<1x1x128xf32>
    %126 = vector.broadcast %cst_37 : f32 to vector<1x1x128xf32>
    %127 = arith.select %123, %125, %126 : vector<1x1x128xi1>, vector<1x1x128xf32>
    %128 = vector.shape_cast %115 : vector<1x1x1xf32> to vector<1x1x1xf32>
    %129 = vector.broadcast %128 : vector<1x1x1xf32> to vector<1x1x128xf32>
    %130 = arith.select %121, %129, %127 : vector<1x1x128xi1>, vector<1x1x128xf32>
    %c0_38 = arith.constant 0 : index
    %c0_39 = arith.constant 0 : index
    %c0_40 = arith.constant 0 : index
    %131 = vector.load %arg3[%c0_38, %c0_39, %c0_40] : memref<1x1x128xf32, #tpu.memory_space<vmem>>, vector<1x1x128xf32>
    tpu.vector_store %arg3[%c0_38, %c0_39, %c0_40], %130 {strides = array<i32>} : memref<1x1x128xf32, #tpu.memory_space<vmem>>, vector<1x1x128xf32>,
    return
  }
  func.func @transform_0(%arg0: i32) -> (i32, i32) {
    %c0_i32 = arith.constant 0 : i32
    %c0_i32_0 = arith.constant 0 : i32
    return %arg0, %c0_i32 : i32, i32
  }
  func.func @transform_1(%arg0: i32) -> (i32, i32) {
    %c0_i32 = arith.constant 0 : i32
    %c0_i32_0 = arith.constant 0 : i32
    return %arg0, %c0_i32 : i32, i32
  }
  func.func @transform_2(%arg0: i32) -> (i32, i32, i32) {
    %c0_i32 = arith.constant 0 : i32
    %c0_i32_0 = arith.constant 0 : i32
    %c0_i32_1 = arith.constant 0 : i32
    return %arg0, %c0_i32, %c0_i32_0 : i32, i32, i32
  }
}

</mosaic_0001>

<llo_original>
// kernel: cls_loss.1
$region0: #{cls_loss.1}
  #allocation0 [shape = 'u32[]', space=smem, size = 0x4, offset = 0x4, fixed_abs, tag = 'smem constant byte address 0x4 - core index']
  #allocation1 [shape = 'u32[144,128]{1,0:T(1,128)}', space=vmem, size = 0x12000, scoped, tag = 'internal scratch']
  %s0 = inlined_call_operand.vmem [shape: f32[4,128], index: 0, kind: input, shape index: {}]
  %s1 = inlined_call_operand.vmem [shape: s32[4,4], index: 1, kind: input, shape index: {}]
  %s2 = inlined_call_operand.vmem [shape: f32[1,1,128], index: 2, kind: output, shape index: {}]
  %s3 = sld [smem:[#allocation0]]
  $region18: #{cls_loss.1} parent=0
    _
  %s5 = ssub.s32 1, %s3
  %s6 = scalar_select 0, %s5, %s3
  // Predicated region
  $region2: #{cls_loss.1} parent=0 // pred_check
    _
  $region3: #{cls_loss.1} parent=0 // pred_check_branch
    %8 = sbr.rel (0) target = $region5
  $region4: #{cls_loss.1} parent=0 // pred_region
    _
  $region5: #{cls_loss.1} parent=0 // pred_fallthru
    _
  // Predicated region
  $region6: #{cls_loss.1} parent=0 // pred_check
    _
  $region7: #{cls_loss.1} parent=0 // pred_check_branch
    %10 = sbr.rel (0) target = $region9
  $region8: #{cls_loss.1} parent=0 // pred_region
    _
  $region9: #{cls_loss.1} parent=0 // pred_fallthru
    _
  %s11 = smul.u32 0, 4
  %v12 = vlaneseq
  %v13 = vshrl.u32 %v12, 7
  %v14 = vstv %s11
  %v15 = vadd.s32 %v14, %v13
  %vm16 = vcmp.lt.s32.totalorder %v15, 4
  %v17 = vlaneseq
  %v18 = vand.u32 %v17, 127
  %v19 = vld [vmem:[%s0] sm:$0xf]
  %v20 = vld [vmem:[%s1] sm:$0xf]
  %vm21 = vcmask 257024
  %v22 = vsel %vm21, %v19, -inf
  %23 = vmax.xlane.f32.xlu0 %v22
  %v24 = vpop.xlane.xlu0 %23
  %v25 = vsub.f32 %v19, %v24
  %v26 = vmul.f32 %v25, 1.442695
  %v27 = vpow.pop %v26
  %v28 = vsel %vm21, %v27, 0.0
  %29 = vadd.xlane.f32.xlu0 %v28
  %v30 = vpop.xlane.xlu0 %29
  %31 = vset.pattern.permute.xlu0 0
  %32 = vperm.xlu0 %31, %v20
  %v33 = vpop.permute.xlu0 %32
  %vm34 = vcmp.eq.s32.totalorder %v18, %v33
  %v35 = vsel %vm34, %v25, 0.0
  %v36 = vsel %vm21, %v35, 0.0
  %37 = vadd.xlane.f32.xlu0 %v36
  %v38 = vpop.xlane.xlu0 %37
  %vm39 = vcmp.ne.s32.totalorder %v20, 0
  %vm40 = vmand %vm16, %vm39
  %v41 = vlog2.pop %v30
  %v42 = vmul.f32 %v41, 0.6931472
  %v43 = vsub.f32 %v42, %v38
  %v44 = vsel %vm40, %v43, 0.0
  %v45 = vadd.f32 %v44, 0.0
  %v46 = vsel %vm40, 1, 0
  %v47 = vcvt.s32.f32 %v46
  %v48 = vadd.f32 %v47, 0.0
  %vm49 = vcmask 519424
  %v50 = vsel %vm49, %v19, -inf
  %51 = vmax.xlane.f32.xlu0 %v50
  %v52 = vpop.xlane.xlu0 %51
  %v53 = vsub.f32 %v19, %v52
  %v54 = vmul.f32 %v53, 1.442695
  %v55 = vpow.pop %v54
  %57 = vrot.lane.b32.xlu0 %v55, 96
  %v58 = vpop.permute.xlu0 %57
  %v60 = vsel %vm21, %v58, 0.0
  %61 = vadd.xlane.f32.xlu0 %v60
  %v62 = vpop.xlane.xlu0 %61
  %63 = vset.pattern.permute.xlu0 1
  %64 = vperm.xlu0 %63, %v20
  %v65 = vpop.permute.xlu0 %64
  %vm66 = vcmp.eq.s32.totalorder %v18, %v65
  %68 = vrot.lane.b32.xlu0 %v53, 96
  %v69 = vpop.permute.xlu0 %68
  %v71 = vsel %vm66, %v69, 0.0
  %v72 = vsel %vm21, %v71, 0.0
  %73 = vadd.xlane.f32.xlu0 %v72
  %v74 = vpop.xlane.xlu0 %73
  %v75 = vlog2.pop %v62
  %v76 = vmul.f32 %v75, 0.6931472
  %v77 = vsub.f32 %v76, %v74
  %v78 = vsel %vm40, %v77, 0.0
  %80 = vrot.lane.b32.xlu0 %v78, 127
  %v81 = vpop.permute.xlu0 %80
  %v83 = vadd.f32 %v45, %v81
  %85 = vrot.lane.b32.xlu0 %v47, 127
  %v86 = vpop.permute.xlu0 %85
  %v88 = vadd.f32 %v48, %v86
  %vm89 = vcmask 781824
  %v90 = vsel %vm89, %v19, -inf
  %91 = vmax.xlane.f32.xlu0 %v90
  %v92 = vpop.xlane.xlu0 %91
  %v93 = vsub.f32 %v19, %v92
  %v94 = vmul.f32 %v93, 1.442695
  %v95 = vpow.pop %v94
  %97 = vrot.lane.b32.xlu0 %v95, 64
  %v98 = vpop.permute.xlu0 %97
  %v100 = vsel %vm21, %v98, 0.0
  %101 = vadd.xlane.f32.xlu0 %v100
  %v102 = vpop.xlane.xlu0 %101
  %103 = vset.pattern.permute.xlu0 2
  %104 = vperm.xlu0 %103, %v20
  %v105 = vpop.permute.xlu0 %104
  %vm106 = vcmp.eq.s32.totalorder %v18, %v105
  %108 = vrot.lane.b32.xlu0 %v93, 64
  %v109 = vpop.permute.xlu0 %108
  %v111 = vsel %vm106, %v109, 0.0
  %v112 = vsel %vm21, %v111, 0.0
  %113 = vadd.xlane.f32.xlu0 %v112
  %v114 = vpop.xlane.xlu0 %113
  %v115 = vlog2.pop %v102
  %v116 = vmul.f32 %v115, 0.6931472
  %v117 = vsub.f32 %v116, %v114
  %v118 = vsel %vm40, %v117, 0.0
  %120 = vrot.lane.b32.xlu0 %v118, 126
  %v121 = vpop.permute.xlu0 %120
  %v123 = vadd.f32 %v83, %v121
  %124 = vrot.lane.b32.xlu0 %v47, 126
  %v125 = vpop.permute.xlu0 %124
  %v127 = vadd.f32 %v88, %v125
  %vm128 = vcmask 1044224
  %v129 = vsel %vm128, %v19, -inf
  %130 = vmax.xlane.f32.xlu0 %v129
  %v131 = vpop.xlane.xlu0 %130
  %v132 = vsub.f32 %v19, %v131
  %v133 = vmul.f32 %v132, 1.442695
  %v134 = vpow.pop %v133
  %136 = vrot.lane.b32.xlu0 %v134, 32
  %v137 = vpop.permute.xlu0 %136
  %v139 = vsel %vm21, %v137, 0.0
  %140 = vadd.xlane.f32.xlu0 %v139
  %v141 = vpop.xlane.xlu0 %140
  %142 = vset.pattern.permute.xlu0 3
  %143 = vperm.xlu0 %142, %v20
  %v144 = vpop.permute.xlu0 %143
  %vm145 = vcmp.eq.s32.totalorder %v18, %v144
  %147 = vrot.lane.b32.xlu0 %v132, 32
  %v148 = vpop.permute.xlu0 %147
  %v150 = vsel %vm145, %v148, 0.0
  %v151 = vsel %vm21, %v150, 0.0
  %152 = vadd.xlane.f32.xlu0 %v151
  %v153 = vpop.xlane.xlu0 %152
  %v154 = vlog2.pop %v141
  %v155 = vmul.f32 %v154, 0.6931472
  %v156 = vsub.f32 %v155, %v153
  %v157 = vsel %vm40, %v156, 0.0
  %159 = vrot.lane.b32.xlu0 %v157, 125
  %v160 = vpop.permute.xlu0 %159
  %v162 = vadd.f32 %v123, %v160
  %163 = vrot.lane.b32.xlu0 %v47, 125
  %v164 = vpop.permute.xlu0 %163
  %v166 = vadd.f32 %v127, %v164
  %vm167 = vcmask 3072
  %v168 = vsel %vm167, %v162, 0.0
  %v169 = vrot.slane %v168, 4
  %v170 = vadd.f32 %v168, %v169
  %v171 = vrot.slane %v170, 2
  %v172 = vadd.f32 %v170, %v171
  %v173 = vrot.slane %v172, 1
  %v174 = vadd.f32 %v172, %v173
  %v175 = vsel %vm167, %v166, 0.0
  %v176 = vrot.slane %v175, 4
  %v177 = vadd.f32 %v175, %v176
  %v178 = vrot.slane %v177, 2
  %v179 = vadd.f32 %v177, %v178
  %v180 = vrot.slane %v179, 1
  %v181 = vadd.f32 %v179, %v180
  %vm182 = vcmp.eq.s32.totalorder %v18, 0
  %vm183 = vcmp.eq.s32.totalorder %v18, 1
  %185 = vset.pattern.permute.xlu0 0
  %186 = vperm.xlu0 %185, %v181
  %v187 = vpop.permute.xlu0 %186
  %v189 = vsel %vm183, %v187, 0.0
  %191 = vset.pattern.permute.xlu0 0
  %192 = vperm.xlu0 %191, %v174
  %v193 = vpop.permute.xlu0 %192
  %v195 = vsel %vm182, %v193, %v189
  %196 = vst [vmem:[%s2] sm:$0x1] %v195
  // Predicated region
  $region10: #{cls_loss.1} parent=0 // pred_check
    _
  $region11: #{cls_loss.1} parent=0 // pred_check_branch
    %198 = sbr.rel (0) target = $region13
  $region12: #{cls_loss.1} parent=0 // pred_region
    _
  $region13: #{cls_loss.1} parent=0 // pred_fallthru
    _
  // Predicated region
  $region14: #{cls_loss.1} parent=0 // pred_check
    _
  $region15: #{cls_loss.1} parent=0 // pred_check_branch
    %200 = sbr.rel (0) target = $region17
  $region16: #{cls_loss.1} parent=0 // pred_region
    _
  $region17: #{cls_loss.1} parent=0 // pred_fallthru
    _

</llo_original>
